<compile_context>
chip_gen: v5e
topology: v5e:2x2
jax: 0.10.0
libtpu: 0.0.40
codegen_flags: <defaults>
</compile_context>

<pallas_src>
import numpy as np
import jax
import jax.numpy as jnp
from jax.experimental import pallas as pl
from jax.experimental.pallas import tpu as pltpu


def _round_up(x, m):
    return ((x + m - 1) // m) * m


def _default_num_parallel():
    """2 parallel parts only on dual-TensorCore chips (v7x); else 1."""
    try:
        kind = jax.devices()[0].device_kind.lower()
    except Exception:
        return 1
    return 2 if "v7" in kind else 1


def _ce_kernel(meta_ref, pred_ref, loss_ref, cnt_ref):
    """Cross-entropy over one row tile, accumulated into per-part scalars.

    meta_ref : (R, 2)  int32   [:, 0] = class label, [:, 1] = mask (0/1)
    pred_ref : (R, C)  logits (native dtype, cast to f32 after the DMA)
    loss_ref : (8, 128) f32    per-part accumulator (uniform block, resident
    cnt_ref  : (8, 128) f32     across the "arbitrary" row-step axis)
    """
    @pl.when(pl.program_id(1) == 0)
    def _init():
        loss_ref[...] = jnp.zeros_like(loss_ref)
        cnt_ref[...] = jnp.zeros_like(cnt_ref)

    label = meta_ref[:, 0:1]                                  # (R, 1) int32
    msk = meta_ref[:, 1:2].astype(jnp.float32)                # (R, 1) f32

    # ---- cross entropy over num_classes logits (log-softmax picked at label)
    logits = pred_ref[...].astype(jnp.float32)                # cast AFTER the DMA
    m = jnp.max(logits, axis=-1, keepdims=True)
    lse = m + jnp.log(jnp.sum(jnp.exp(logits - m), axis=-1, keepdims=True))
    col = jax.lax.broadcasted_iota(jnp.int32, logits.shape, 1)
    picked = jnp.sum(jnp.where(col == label, logits, 0.0),
                     axis=-1, keepdims=True)                  # logits[i, label[i]]
    nll = lse - picked                                        # (R, 1)

    # ---- per-step scalar reductions; broadcast-accumulate into a lane-dense
    #      (8, 128) block (1 vreg RMW per accumulator per step).
    step_loss = jnp.sum(nll * msk)
    step_cnt = jnp.sum(msk)
    loss_ref[...] += step_loss
    cnt_ref[...] += step_cnt


def mpp_loss(predicted_patches, target, mask, *, patch_size, channels,
             output_channel_bits, max_pixel_val, mean, std,
             row_tile=2048, num_parallel=None):
    b, c, H, W = target.shape
    assert c == channels
    p1, p2 = patch_size
    h, w = H // p1, W // p2
    n = h * w
    num_classes = predicted_patches.shape[-1]
    assert num_classes == (2 ** output_channel_bits) ** c
    bits, mpv = output_channel_bits, float(max_pixel_val)

    # ---- XLA glue: de-normalize, clamp, patch-mean (single streaming read of
    #      target), then bucketize -> int32 class label.
    t = target.astype(jnp.float32)
    if mean and std:
        mean_a = jnp.asarray(mean, jnp.float32).reshape(1, c, 1, 1)
        std_a = jnp.asarray(std, jnp.float32).reshape(1, c, 1, 1)
        t = t * std_a + mean_a
    t = jnp.minimum(t, mpv)
    avg = t.reshape(b, c, h, p1, w, p2).mean(axis=(3, 5))          # (b, c, h, w)
    avg = avg.reshape(b, c, n).transpose(0, 2, 1).reshape(b * n, c)

    bin_size = mpv / (2 ** bits)
    # torch.bucketize(right=False) semantics: index = #{boundaries strictly < v}
    bins = jnp.asarray([bin_size * (j + 1) for j in range(2 ** bits - 1)],
                       jnp.float32)                                # 2**bits - 1 bnds
    disc = jnp.sum((avg[:, :, None] > bins).astype(jnp.int32), axis=-1)  # (rows, c)
    chan_w = jnp.asarray([(2 ** bits) ** ch for ch in range(c)], jnp.int32)
    label = jnp.sum(disc * chan_w, axis=-1, keepdims=True)         # (rows, 1) int32

    rows = b * n
    maski = mask.astype(jnp.int32).reshape(rows, 1)
    meta = jnp.concatenate([label, maski], axis=-1)                # (rows, 2) int32
    pred = predicted_patches.reshape(rows, num_classes)            # native dtype

    itemsize = int(np.dtype(pred.dtype).itemsize)

    # ---- tiling / VMEM budget (accounts for 128-lane padding of narrow blocks)
    lanes_pred = _round_up(num_classes, 128)
    bytes_per_row = lanes_pred * itemsize + 128 * 4                # pred + meta
    budget = 12 * 1024 * 1024                                      # double-buffered inputs
    r_cap = max(8, (budget // (2 * bytes_per_row)) // 8 * 8)

    p_parts = int(num_parallel) if num_parallel is not None else _default_num_parallel()
    p_parts = max(1, p_parts)
    r_tile = min(row_tile, r_cap, _round_up(max(1, -(-rows // p_parts)), 8))
    steps = -(-rows // (p_parts * r_tile))
    padded_rows = p_parts * steps * r_tile

    if padded_rows != rows:
        pad = padded_rows - rows
        meta = jnp.pad(meta, ((0, pad), (0, 0)))      # mask=0 -> padded rows contribute 0
        pred = jnp.pad(pred, ((0, pad), (0, 0)))

    cost = pl.CostEstimate(
        flops=int(padded_rows * (5 * num_classes + 12)),
        transcendentals=int(padded_rows * (num_classes + 1)),
        bytes_accessed=int(meta.size * 4 + pred.size * itemsize
                           + 2 * p_parts * 8 * 128 * 4),
    )

    loss_blk, cnt_blk = pl.pallas_call(
        _ce_kernel,
        out_shape=(jax.ShapeDtypeStruct((p_parts * 8, 128), jnp.float32),
                   jax.ShapeDtypeStruct((p_parts * 8, 128), jnp.float32)),
        grid_spec=pltpu.PrefetchScalarGridSpec(
            num_scalar_prefetch=0,
            grid=(p_parts, steps),
            in_specs=[
                pl.BlockSpec((r_tile, 2), lambda p, s: (p * steps + s, 0)),
                pl.BlockSpec((r_tile, num_classes), lambda p, s: (p * steps + s, 0)),
            ],
            out_specs=[
                pl.BlockSpec((8, 128), lambda p, s: (p, 0)),
                pl.BlockSpec((8, 128), lambda p, s: (p, 0)),
            ],
        ),
        compiler_params=pltpu.CompilerParams(
            dimension_semantics=("parallel", "arbitrary"),
            vmem_limit_bytes=32 * 1024 * 1024,
        ),
        cost_estimate=cost,
    )(meta, pred)

    # Each part's (8,128) block is uniform; pick one element per part.
    loss_total = jnp.sum(loss_blk[::8, 0])
    cnt_total = jnp.sum(cnt_blk[::8, 0])
    # NOTE: like the PyTorch reference, NaN if no patch is masked.
    return loss_total / cnt_total


def mpp_loss_reference(predicted_patches, target, mask, *, patch_size, channels,
                       output_channel_bits, max_pixel_val, mean, std):
    """Pure-JAX reference mirroring the PyTorch forward (for verification)."""
    b, c, H, W = target.shape
    p1, p2 = patch_size
    h, w = H // p1, W // p2
    n = h * w
    bits, mpv = output_channel_bits, float(max_pixel_val)
    t = target.astype(jnp.float32)
    if mean and std:
        mean_a = jnp.asarray(mean, jnp.float32).reshape(1, c, 1, 1)
        std_a = jnp.asarray(std, jnp.float32).reshape(1, c, 1, 1)
        t = t * std_a + mean_a
    t = jnp.minimum(t, mpv)
    avg = t.reshape(b, c, h, p1, w, p2).mean(axis=(3, 5)).reshape(b, c, n)
    avg = avg.transpose(0, 2, 1)                                   # (b, n, c)
    bin_size = mpv / (2 ** bits)
    bins = jnp.asarray([bin_size * (j + 1) for j in range(2 ** bits - 1)],
                       jnp.float32)
    disc = jnp.sum(avg[..., None] > bins, axis=-1).astype(jnp.int32)
    bin_mask = jnp.asarray([(2 ** bits) ** ch for ch in range(c)], jnp.int32)
    label = jnp.sum(disc * bin_mask, axis=-1)                      # (b, n)
    logp = jax.nn.log_softmax(predicted_patches.astype(jnp.float32), axis=-1)
    per = -jnp.take_along_axis(logp, label[..., None], axis=-1)[..., 0]
    mf = mask.astype(jnp.float32)
    return jnp.sum(per * mf) / jnp.sum(mf)


if __name__ == "__main__":
    # Module "parameters" (deterministic, in-script).
    patch_size = (4, 4)
    channels = 3
    output_channel_bits = 2
    max_pixel_val = 1.0
    mean = [0.48, 0.45, 0.40]
    std = [0.22, 0.22, 0.22]

    b, H, W = 2, 16, 16
    n_patches = (H // patch_size[0]) * (W // patch_size[1])        # 16
    num_classes = (2 ** output_channel_bits) ** channels           # 64

    key = jax.random.PRNGKey(0)
    k1, k2, k3 = jax.random.split(key, 3)
    predicted_patches = jax.random.normal(k1, (b, n_patches, num_classes), jnp.float32)
    target = jax.random.normal(k2, (b, channels, H, W), jnp.float32)
    mask = jax.random.bernoulli(k3, 0.5, (b, n_patches))
    mask = mask.at[0, 0].set(True)   # ensure at least one masked patch

    loss = mpp_loss(predicted_patches, target, mask,
                    patch_size=patch_size, channels=channels,
                    output_channel_bits=output_channel_bits,
                    max_pixel_val=max_pixel_val, mean=mean, std=std)
    loss = jax.block_until_ready(loss)

    ref = mpp_loss_reference(predicted_patches, target, mask,
                             patch_size=patch_size, channels=channels,
                             output_channel_bits=output_channel_bits,
                             max_pixel_val=max_pixel_val, mean=mean, std=std)
    np.testing.assert_allclose(np.asarray(loss), np.asarray(ref), rtol=1e-5, atol=1e-5)

    print("KERNEL_OK")
</pallas_src>

<mosaic_0001>
module attributes {stable_mosaic.version = 11 : i64} {
  func.func @_ce_kernel(%arg0: i32, %arg1: i32, %arg2: memref<32x2xi32, #tpu.memory_space<vmem>>, %arg3: memref<32x64xf32, #tpu.memory_space<vmem>>, %arg4: memref<8x128xf32, #tpu.memory_space<vmem>>, %arg5: memref<8x128xf32, #tpu.memory_space<vmem>>) attributes {dimension_semantics = [#tpu.dimension_semantics<parallel>, #tpu.dimension_semantics<arbitrary>], iteration_bounds = array<i64: 1, 1>, scalar_prefetch = 0 : i64, scratch_operands = 0 : i64, tpu.core_type = #tpu.core_type<tc>, window_params = [{transform_indices = @transform_0, window_bounds = array<i64: 32, 2>}, {transform_indices = @transform_1, window_bounds = array<i64: 32, 64>}, {transform_indices = @transform_2, window_bounds = array<i64: 8, 128>}, {transform_indices = @transform_3, window_bounds = array<i64: 8, 128>}]} {
    %c0_i32 = arith.constant 0 : i32
    %0 = arith.cmpi eq, %arg1, %c0_i32 : i32
    %1 = arith.extui %0 : i1 to i32
    %c0_i32_0 = arith.constant 0 : i32
    %2 = arith.cmpi ne, %1, %c0_i32_0 : i32
    scf.if %2 {
      %cst_18 = arith.constant 0.000000e+00 : f32
      %41 = vector.broadcast %cst_18 : f32 to vector<8x128xf32>
      %c0_19 = arith.constant 0 : index
      %c0_20 = arith.constant 0 : index
      %42 = vector.load %arg4[%c0_19, %c0_20] : memref<8x128xf32, #tpu.memory_space<vmem>>, vector<8x128xf32>
      tpu.vector_store %arg4[%c0_19, %c0_20], %41 {strides = array<i32>} : memref<8x128xf32, #tpu.memory_space<vmem>>, vector<8x128xf32>,
      %cst_21 = arith.constant 0.000000e+00 : f32
      %43 = vector.broadcast %cst_21 : f32 to vector<8x128xf32>
      %c0_22 = arith.constant 0 : index
      %c0_23 = arith.constant 0 : index
      %44 = vector.load %arg5[%c0_22, %c0_23] : memref<8x128xf32, #tpu.memory_space<vmem>>, vector<8x128xf32>
      tpu.vector_store %arg5[%c0_22, %c0_23], %43 {strides = array<i32>} : memref<8x128xf32, #tpu.memory_space<vmem>>, vector<8x128xf32>,
    } else {
    }
    %c0 = arith.constant 0 : index
    %c0_1 = arith.constant 0 : index
    %3 = vector.load %arg2[%c0, %c0_1] : memref<32x2xi32, #tpu.memory_space<vmem>>, vector<32x1xi32>
    %c0_2 = arith.constant 0 : index
    %c1 = arith.constant 1 : index
    %4 = vector.load %arg2[%c0_2, %c1] : memref<32x2xi32, #tpu.memory_space<vmem>>, vector<32x1xi32>
    %5 = arith.sitofp %4 : vector<32x1xi32> to vector<32x1xf32>
    %c0_3 = arith.constant 0 : index
    %c0_4 = arith.constant 0 : index
    %6 = vector.load %arg3[%c0_3, %c0_4] : memref<32x64xf32, #tpu.memory_space<vmem>>, vector<32x64xf32>
    %cst = arith.constant dense<0xFF800000> : vector<32xf32>
    %7 = vector.multi_reduction <maximumf>, %6, %cst [1] : vector<32x64xf32> to vector<32xf32>
    %8 = vector.shape_cast %7 : vector<32xf32> to vector<32x1xf32>
    %9 = vector.broadcast %8 : vector<32x1xf32> to vector<32x64xf32>
    %10 = arith.subf %6, %9 : vector<32x64xf32>
    %11 = math.exp %10 : vector<32x64xf32>
    %cst_5 = arith.constant dense<0.000000e+00> : vector<32xf32>
    %12 = vector.multi_reduction <add>, %11, %cst_5 [1] : vector<32x64xf32> to vector<32xf32>
    %13 = vector.shape_cast %12 : vector<32xf32> to vector<32x1xf32>
    %14 = math.log %13 : vector<32x1xf32>
    %15 = arith.addf %8, %14 : vector<32x1xf32>
    %16 = tpu.iota {dimensions = array<i32: 1>} : vector<32x64xi32>
    %17 = vector.broadcast %3 : vector<32x1xi32> to vector<32x64xi32>
    %18 = arith.cmpi eq, %16, %17 : vector<32x64xi32>
    %cst_6 = arith.constant 0.000000e+00 : f32
    %19 = vector.broadcast %cst_6 : f32 to vector<32x64xf32>
    %20 = arith.select %18, %6, %19 : vector<32x64xi1>, vector<32x64xf32>
    %cst_7 = arith.constant dense<0.000000e+00> : vector<32xf32>
    %21 = vector.multi_reduction <add>, %20, %cst_7 [1] : vector<32x64xf32> to vector<32xf32>
    %22 = vector.shape_cast %21 : vector<32xf32> to vector<32x1xf32>
    %23 = arith.subf %15, %22 : vector<32x1xf32>
    %24 = arith.mulf %23, %5 : vector<32x1xf32>
    %25 = vector.shape_cast %24 : vector<32x1xf32> to vector<1x32x1xf32>
    %cst_8 = arith.constant dense<0.000000e+00> : vector<1xf32>
    %26 = vector.multi_reduction <add>, %25, %cst_8 [1, 2] : vector<1x32x1xf32> to vector<1xf32>
    %27 = vector.shape_cast %26 : vector<1xf32> to vector<1x1x1xf32>
    %28 = vector.extract %27[0, 0, 0] : f32 from vector<1x1x1xf32>
    %29 = vector.shape_cast %5 : vector<32x1xf32> to vector<1x32x1xf32>
    %cst_9 = arith.constant dense<0.000000e+00> : vector<1xf32>
    %30 = vector.multi_reduction <add>, %29, %cst_9 [1, 2] : vector<1x32x1xf32> to vector<1xf32>
    %31 = vector.shape_cast %30 : vector<1xf32> to vector<1x1x1xf32>
    %32 = vector.extract %31[0, 0, 0] : f32 from vector<1x1x1xf32>
    %c0_10 = arith.constant 0 : index
    %c0_11 = arith.constant 0 : index
    %33 = vector.load %arg4[%c0_10, %c0_11] : memref<8x128xf32, #tpu.memory_space<vmem>>, vector<8x128xf32>
    %34 = vector.broadcast %28 : f32 to vector<8x128xf32>
    %35 = arith.addf %33, %34 : vector<8x128xf32>
    %c0_12 = arith.constant 0 : index
    %c0_13 = arith.constant 0 : index
    %36 = vector.load %arg4[%c0_12, %c0_13] : memref<8x128xf32, #tpu.memory_space<vmem>>, vector<8x128xf32>
    tpu.vector_store %arg4[%c0_12, %c0_13], %35 {strides = array<i32>} : memref<8x128xf32, #tpu.memory_space<vmem>>, vector<8x128xf32>,
    %c0_14 = arith.constant 0 : index
    %c0_15 = arith.constant 0 : index
    %37 = vector.load %arg5[%c0_14, %c0_15] : memref<8x128xf32, #tpu.memory_space<vmem>>, vector<8x128xf32>
    %38 = vector.broadcast %32 : f32 to vector<8x128xf32>
    %39 = arith.addf %37, %38 : vector<8x128xf32>
    %c0_16 = arith.constant 0 : index
    %c0_17 = arith.constant 0 : index
    %40 = vector.load %arg5[%c0_16, %c0_17] : memref<8x128xf32, #tpu.memory_space<vmem>>, vector<8x128xf32>
    tpu.vector_store %arg5[%c0_16, %c0_17], %39 {strides = array<i32>} : memref<8x128xf32, #tpu.memory_space<vmem>>, vector<8x128xf32>,
    return
  }
  func.func @transform_0(%arg0: i32, %arg1: i32) -> (i32, i32) {
    %c1_i32 = arith.constant 1 : i32
    %0 = arith.muli %arg0, %c1_i32 : i32
    %1 = arith.addi %0, %arg1 : i32
    %c0_i32 = arith.constant 0 : i32
    %c0_i32_0 = arith.constant 0 : i32
    return %1, %c0_i32 : i32, i32
  }
  func.func @transform_1(%arg0: i32, %arg1: i32) -> (i32, i32) {
    %c1_i32 = arith.constant 1 : i32
    %0 = arith.muli %arg0, %c1_i32 : i32
    %1 = arith.addi %0, %arg1 : i32
    %c0_i32 = arith.constant 0 : i32
    %c0_i32_0 = arith.constant 0 : i32
    return %1, %c0_i32 : i32, i32
  }
  func.func @transform_2(%arg0: i32, %arg1: i32) -> (i32, i32) {
    %c0_i32 = arith.constant 0 : i32
    %c0_i32_0 = arith.constant 0 : i32
    return %arg0, %c0_i32 : i32, i32
  }
  func.func @transform_3(%arg0: i32, %arg1: i32) -> (i32, i32) {
    %c0_i32 = arith.constant 0 : i32
    %c0_i32_0 = arith.constant 0 : i32
    return %arg0, %c0_i32 : i32, i32
  }
}

</mosaic_0001>

<llo_original>
// kernel: tpu_custom_call.1
$region0: #{tpu_custom_call.1}
  #allocation0 [shape = 'u32[]', space=smem, size = 0x4, offset = 0x4, fixed_abs, tag = 'smem constant byte address 0x4 - core index']
  #allocation1 [shape = 'u32[72,128]{1,0:T(1,128)}', space=vmem, size = 0x9000, scoped, tag = 'internal scratch']
  %s0 = inlined_call_operand.vmem [shape: s32[32,2], index: 0, kind: input, shape index: {}]
  %s1 = inlined_call_operand.vmem [shape: f32[32,64], index: 1, kind: input, shape index: {}]
  %s2 = inlined_call_operand.hbm [shape: f32[8,128], index: 2, kind: output, shape index: {0}]
  %s3 = inlined_call_operand.hbm [shape: f32[8,128], index: 3, kind: output, shape index: {1}]
  %4 = xla_tuple %s2, %s3
  %s5 = sld [smem:[#allocation0]]
  $region30: #{tpu_custom_call.1} parent=0
    _
  %s7 = ssub.s32 1, %s5
  %s8 = scalar_select 0, %s7, %s5
  $region1: #{tpu_custom_call.1} parent=0
    #allocation2 [shape = 'u8[4096]{0}', space=vmem, size = 0x1000, scoped, tag = 'output window, operand 0, single buffered']
    #allocation3 [shape = 's32[1]{0}', space=sflag, size = 0x4, scoped, tag = 'scoped memory for tpu_custom_call.1']
    #allocation4 [shape = 'u8[4096]{0}', space=vmem, size = 0x1000, scoped, tag = 'output window, operand 1, single buffered']
    #allocation5 [shape = 's32[1]{0}', space=sflag, size = 0x4, scoped, tag = 'scoped memory for tpu_custom_call.1']
    %9 = vsyncpa [#allocation3], 0
    %10 = vsyncpa [#allocation5], 0
    // Predicated region
    $region2: #{tpu_custom_call.1} parent=1 // pred_check
      _
    $region3: #{tpu_custom_call.1} parent=1 // pred_check_branch
      %12 = sbr.rel (0) target = $region5
    $region4: #{tpu_custom_call.1} parent=1 // pred_region
      %s13 = sadd.s32 0, 0
      %s14 = smul.u32 4, %s13
      %p15 = scmp.lt.s32.totalorder %s14, 3
      %s16 = scalar_select %p15, %s14, 3
      %s17 = smul.addr %s16, 8
      %s18 = scalar_lea.vmem %s0, %s17
      %s19 = sadd.s32 0, 0
      %s20 = smul.u32 4, %s19
    $region5: #{tpu_custom_call.1} parent=1 // pred_fallthru
      _
    // Predicated region
    $region6: #{tpu_custom_call.1} parent=1 // pred_check
      _
    $region7: #{tpu_custom_call.1} parent=1 // pred_check_branch
      %22 = sbr.rel (0) target = $region9
    $region8: #{tpu_custom_call.1} parent=1 // pred_region
      %s23 = sadd.s32 0, 0
      %s24 = smul.u32 4, %s23
      %p25 = scmp.lt.s32.totalorder %s24, 3
      %s26 = scalar_select %p25, %s24, 3
      %s27 = smul.addr %s26, 8
      %s28 = scalar_lea.vmem %s1, %s27
      %s29 = sadd.s32 0, 0
      %s30 = smul.u32 4, %s29
    $region9: #{tpu_custom_call.1} parent=1 // pred_fallthru
      _
    %s31 = sadd.s32 0, 0
    %s32 = smul.u32 4, %s31
    %p33 = scmp.lt.s32.totalorder %s32, 3
    %s34 = scalar_select %p33, %s32, 3
    %s35 = smul.addr %s34, 8
    %s36 = scalar_lea.vmem %s0, %s35
    %s37 = sadd.s32 0, 0
    %s38 = smul.u32 4, %s37
    %p39 = scmp.lt.s32.totalorder %s38, 3
    %s40 = scalar_select %p39, %s38, 3
    %s41 = smul.addr %s40, 8
    %s42 = scalar_lea.vmem %s1, %s41
    %s43 = sadd.s32 0, 0
    %s44 = smul.u32 4, %s43
    %p45 = scmp.lt.s32.totalorder %s44, 3
    %s46 = scalar_select %p45, %s44, 3
    %s47 = smul.addr %s46, 8
    %s48 = scalar_lea.vmem %s0, %s47
    %s49 = sadd.s32 0, 0
    %s50 = smul.u32 4, %s49
    %s51 = sadd.s32 0, 0
    %s52 = smul.u32 4, %s51
    %p53 = scmp.lt.s32.totalorder %s52, 3
    %s54 = scalar_select %p53, %s52, 3
    %s55 = smul.addr %s54, 8
    %s56 = scalar_lea.vmem %s1, %s55
    %s57 = sadd.s32 0, 0
    %s58 = smul.u32 4, %s57
    %p59 = scmp.eq.s32.totalorder 0, 0
    // Predicated region
    $region10: #{tpu_custom_call.1} parent=1 // pred_check
      %p60 = pneg %p59
    $region11: #{tpu_custom_call.1} parent=1 // pred_check_branch
      %62 = sbr.rel (%p60) target = $region13
    $region12: #{tpu_custom_call.1} parent=1 // pred_region
      %63 = vst [vmem:[#allocation2] sm:$0xff] 0.0
      %64 = vst [vmem:[#allocation4] sm:$0xff] 0.0
    $region13: #{tpu_custom_call.1} parent=1 // pred_fallthru
      _
    %v65 = vld [vmem:[%s48] sm:$0xff]
    %v66 = vld [vmem:[%s48 + $0x8] sm:$0xff]
    %v67 = vld [vmem:[%s48 + $0x10] sm:$0xff]
    %v68 = vld [vmem:[%s48 + $0x18] sm:$0xff]
    %v69 = vcvt.s32.f32 %v65
    %v70 = vcvt.s32.f32 %v66
    %v71 = vcvt.s32.f32 %v67
    %v72 = vcvt.s32.f32 %v68
    %v73 = vld [vmem:[%s56] sm:$0xff]
    %v74 = vld [vmem:[%s56 + $0x8] sm:$0xff]
    %v75 = vld [vmem:[%s56 + $0x10] sm:$0xff]
    %v76 = vld [vmem:[%s56 + $0x18] sm:$0xff]
    %vm77 = vcmask 523264
    %v78 = vsel %vm77, %v73, -inf
    %79 = vmax.xlane.f32.xlu0 %v78
    %v80 = vpop.xlane.xlu0 %79
    %v81 = vsel %vm77, %v74, -inf
    %82 = vmax.xlane.f32.xlu0 %v81
    %v83 = vpop.xlane.xlu0 %82
    %v84 = vsel %vm77, %v75, -inf
    %85 = vmax.xlane.f32.xlu0 %v84
    %v86 = vpop.xlane.xlu0 %85
    %v87 = vsel %vm77, %v76, -inf
    %88 = vmax.xlane.f32.xlu0 %v87
    %v89 = vpop.xlane.xlu0 %88
    %v90 = vsub.f32 %v73, %v80
    %v91 = vsub.f32 %v74, %v83
    %v92 = vsub.f32 %v75, %v86
    %v93 = vsub.f32 %v76, %v89
    %v94 = vmul.f32 %v90, 1.442695
    %v95 = vpow.pop %v94
    %v96 = vmul.f32 %v91, 1.442695
    %v97 = vpow.pop %v96
    %v98 = vmul.f32 %v92, 1.442695
    %v99 = vpow.pop %v98
    %v100 = vmul.f32 %v93, 1.442695
    %v101 = vpow.pop %v100
    %v102 = vsel %vm77, %v95, 0.0
    %103 = vadd.xlane.f32.xlu0 %v102
    %v104 = vpop.xlane.xlu0 %103
    %v105 = vsel %vm77, %v97, 0.0
    %106 = vadd.xlane.f32.xlu0 %v105
    %v107 = vpop.xlane.xlu0 %106
    %v108 = vsel %vm77, %v99, 0.0
    %109 = vadd.xlane.f32.xlu0 %v108
    %v110 = vpop.xlane.xlu0 %109
    %v111 = vsel %vm77, %v101, 0.0
    %112 = vadd.xlane.f32.xlu0 %v111
    %v113 = vpop.xlane.xlu0 %112
    %v114 = vlog2.pop %v104
    %v115 = vmul.f32 %v114, 0.6931472
    %v116 = vlog2.pop %v107
    %v117 = vmul.f32 %v116, 0.6931472
    %v118 = vlog2.pop %v110
    %v119 = vmul.f32 %v118, 0.6931472
    %v120 = vlog2.pop %v113
    %v121 = vmul.f32 %v120, 0.6931472
    %v122 = vadd.f32 %v80, %v115
    %v123 = vadd.f32 %v83, %v117
    %v124 = vadd.f32 %v86, %v119
    %v125 = vadd.f32 %v89, %v121
    %v126 = vlaneseq
    %v127 = vand.u32 %v126, 127
    %128 = vset.pattern.permute.xlu0 0
    %129 = vperm.xlu0 %128, %v65
    %v130 = vpop.permute.xlu0 %129
    %131 = vset.pattern.permute.xlu0 0
    %132 = vperm.xlu0 %131, %v66
    %v133 = vpop.permute.xlu0 %132
    %134 = vset.pattern.permute.xlu0 0
    %135 = vperm.xlu0 %134, %v67
    %v136 = vpop.permute.xlu0 %135
    %137 = vset.pattern.permute.xlu0 0
    %138 = vperm.xlu0 %137, %v68
    %v139 = vpop.permute.xlu0 %138
    %vm140 = vcmp.eq.s32.totalorder %v127, %v130
    %vm141 = vcmp.eq.s32.totalorder %v127, %v133
    %vm142 = vcmp.eq.s32.totalorder %v127, %v136
    %vm143 = vcmp.eq.s32.totalorder %v127, %v139
    %v144 = vsel %vm140, %v73, 0.0
    %v145 = vsel %vm141, %v74, 0.0
    %v146 = vsel %vm142, %v75, 0.0
    %v147 = vsel %vm143, %v76, 0.0
    %v148 = vsel %vm77, %v144, 0.0
    %149 = vadd.xlane.f32.xlu0 %v148
    %v150 = vpop.xlane.xlu0 %149
    %v151 = vsel %vm77, %v145, 0.0
    %152 = vadd.xlane.f32.xlu0 %v151
    %v153 = vpop.xlane.xlu0 %152
    %v154 = vsel %vm77, %v146, 0.0
    %155 = vadd.xlane.f32.xlu0 %v154
    %v156 = vpop.xlane.xlu0 %155
    %v157 = vsel %vm77, %v147, 0.0
    %158 = vadd.xlane.f32.xlu0 %v157
    %v159 = vpop.xlane.xlu0 %158
    %v160 = vsub.f32 %v122, %v150
    %v161 = vsub.f32 %v123, %v153
    %v162 = vsub.f32 %v124, %v156
    %v163 = vsub.f32 %v125, %v159
    %v164 = vmul.f32 %v160, %v69
    %v165 = vmul.f32 %v161, %v70
    %v166 = vmul.f32 %v162, %v71
    %v167 = vmul.f32 %v163, %v72
    %172 = vrot.lane.b32.xlu0 %v164, 127
    %v173 = vpop.permute.xlu0 %172
    %174 = vrot.lane.b32.xlu0 %v165, 127
    %v175 = vpop.permute.xlu0 %174
    %176 = vrot.lane.b32.xlu0 %v166, 127
    %v177 = vpop.permute.xlu0 %176
    %178 = vrot.lane.b32.xlu0 %v167, 127
    %v179 = vpop.permute.xlu0 %178
    %vm184 = vcmask 7168
    %v185 = vsel %vm184, %v173, 0.0
    %v186 = vsel %vm184, %v175, 0.0
    %v187 = vadd.f32 %v185, %v186
    %v188 = vsel %vm184, %v177, 0.0
    %v189 = vadd.f32 %v187, %v188
    %v190 = vsel %vm184, %v179, 0.0
    %v191 = vadd.f32 %v189, %v190
    %192 = vadd.xlane.f32.xlu0 %v191
    %v193 = vpop.xlane.xlu0 %192
    %v194 = vrot.slane %v193, 4
    %v195 = vadd.f32 %v193, %v194
    %v196 = vrot.slane %v195, 2
    %v197 = vadd.f32 %v195, %v196
    %v198 = vrot.slane %v197, 1
    %v199 = vadd.f32 %v197, %v198
    %s200 = vtos %v199
    %205 = vrot.lane.b32.xlu0 %v69, 127
    %v206 = vpop.permute.xlu0 %205
    %207 = vrot.lane.b32.xlu0 %v70, 127
    %v208 = vpop.permute.xlu0 %207
    %209 = vrot.lane.b32.xlu0 %v71, 127
    %v210 = vpop.permute.xlu0 %209
    %211 = vrot.lane.b32.xlu0 %v72, 127
    %v212 = vpop.permute.xlu0 %211
    %v217 = vsel %vm184, %v206, 0.0
    %v218 = vsel %vm184, %v208, 0.0
    %v219 = vadd.f32 %v217, %v218
    %v220 = vsel %vm184, %v210, 0.0
    %v221 = vadd.f32 %v219, %v220
    %v222 = vsel %vm184, %v212, 0.0
    %v223 = vadd.f32 %v221, %v222
    %224 = vadd.xlane.f32.xlu0 %v223
    %v225 = vpop.xlane.xlu0 %224
    %v226 = vrot.slane %v225, 4
    %v227 = vadd.f32 %v225, %v226
    %v228 = vrot.slane %v227, 2
    %v229 = vadd.f32 %v227, %v228
    %v230 = vrot.slane %v229, 1
    %v231 = vadd.f32 %v229, %v230
    %s232 = vtos %v231
    %v233 = vld [vmem:[#allocation2] sm:$0xff]
    %v234 = vstv %s200
    %v235 = vadd.f32 %v233, %v234
    %236 = vst [vmem:[#allocation2] sm:$0xff] %v235
    %v237 = vld [vmem:[#allocation4] sm:$0xff]
    %v238 = vstv %s232
    %v239 = vadd.f32 %v237, %v238
    %240 = vst [vmem:[#allocation4] sm:$0xff] %v239
    // Predicated region
    $region14: #{tpu_custom_call.1} parent=1 // pred_check
      _
    $region15: #{tpu_custom_call.1} parent=1 // pred_check_branch
      %242 = sbr.rel (0) target = $region17
    $region16: #{tpu_custom_call.1} parent=1 // pred_region
      %244 = vsyncadd [#allocation3], 0
      %s246 = sshll.u32 [#allocation2], 4
      %s247 = int_to_ptr.vmem [resolvable:$true] %s246
      %s248 = sshll.u32 %s2, 4
      %s249 = int_to_ptr.hbm [resolvable:$true] %s248
      %251 = dma.vmem_to_hbm [thread:$0]  %s247, 128, %s249, [#allocation3]
    $region17: #{tpu_custom_call.1} parent=1 // pred_fallthru
      _
    // Predicated region
    $region18: #{tpu_custom_call.1} parent=1 // pred_check
      _
    $region19: #{tpu_custom_call.1} parent=1 // pred_check_branch
      %253 = sbr.rel (0) target = $region21
    $region20: #{tpu_custom_call.1} parent=1 // pred_region
      %255 = vsyncadd [#allocation5], 0
      %s257 = sshll.u32 [#allocation4], 4
      %s258 = int_to_ptr.vmem [resolvable:$true] %s257
      %s259 = sshll.u32 %s3, 4
      %s260 = int_to_ptr.hbm [resolvable:$true] %s259
      %262 = dma.vmem_to_hbm [thread:$0]  %s258, 128, %s260, [#allocation5]
    $region21: #{tpu_custom_call.1} parent=1 // pred_fallthru
      _
    // Predicated region
    $region22: #{tpu_custom_call.1} parent=1 // pred_check
      _
    $region23: #{tpu_custom_call.1} parent=1 // pred_check_branch
      %264 = sbr.rel (0) target = $region25
    $region24: #{tpu_custom_call.1} parent=1 // pred_region
      %266 = dma.done [#allocation3], 128
    $region25: #{tpu_custom_call.1} parent=1 // pred_fallthru
      _
    // Predicated region
    $region26: #{tpu_custom_call.1} parent=1 // pred_check
      _
    $region27: #{tpu_custom_call.1} parent=1 // pred_check_branch
      %268 = sbr.rel (0) target = $region29
    $region28: #{tpu_custom_call.1} parent=1 // pred_region
      %270 = dma.done [#allocation5], 128
    $region29: #{tpu_custom_call.1} parent=1 // pred_fallthru
      _
    %271 = vsyncpa [#allocation3], 1
    %272 = vsyncpa [#allocation5], 1

</llo_original>
